<compile_context>
chip_gen: v5e
topology: v5e:2x2
jax: 0.10.0
libtpu: 0.0.40
codegen_flags: <defaults>
</compile_context>

<pallas_src>
import numpy as np
import jax
import jax.numpy as jnp
from jax.experimental import pallas as pl
from jax.experimental.pallas import tpu as pltpu

HIDDEN = 64                     # MLPBase hidden_size
WIDE = 2 * HIDDEN               # fused actor||critic width (lane-dense 128)
LN_EPS = 1e-5
LOG_2PI = float(np.log(2.0 * np.pi))
assert WIDE == 128, "fused layout assumes hidden_size == 64"


def _policy_kernel(x_ref, w1_ref, w2_ref, wh_ref, p_ref, out_ref):
    """Fused forward on one (TB, F) batch tile.

    x_ref : (TB, F)     observations
    w1_ref: (F, 128)    [Wa1 | Wc1]
    w2_ref: (128, 128)  block-diag(Wa2, Wc2)
    wh_ref: (128, 128)  fused heads (mean cols 0..A-1 from actor half,
                        value col A from critic half, rest zero)
    p_ref : (8, 128)    packed small params:
                        row0 [ga1|gc1]  row1 [ba1|bc1]
                        row2 [ga2|gc2]  row3 [ba2|bc2]
                        row4 head bias (bd, bcl, logp_const, ent_const, 0...)
    out_ref: (TB, 128)  lane-dense output slab
    """
    x = x_ref[...]
    p = p_ref[...]

    col = jax.lax.broadcasted_iota(jnp.int32, (1, WIDE), 1)
    m_a = (col < HIDDEN).astype(jnp.float32)   # actor-half lane mask
    m_c = 1.0 - m_a                            # critic-half lane mask
    inv_h = 1.0 / HIDDEN

    def ln_tanh(h, gamma, beta):
        # LayerNorm over each 64-wide half independently; masked reductions keep the
        # statistics per-half while the data stays lane-dense at 128 (no slice/concat).
        mu = (jnp.sum(h * m_a, axis=-1, keepdims=True) * m_a
              + jnp.sum(h * m_c, axis=-1, keepdims=True) * m_c) * inv_h
        d = h - mu
        var = (jnp.sum(d * d * m_a, axis=-1, keepdims=True) * m_a
               + jnp.sum(d * d * m_c, axis=-1, keepdims=True) * m_c) * inv_h
        return jnp.tanh(d * jax.lax.rsqrt(var + LN_EPS) * gamma + beta)

    h = jnp.dot(x, w1_ref[...], preferred_element_type=jnp.float32)    # (TB, 128)
    h = ln_tanh(h, p[0:1, :], p[1:2, :])
    h = jnp.dot(h, w2_ref[...], preferred_element_type=jnp.float32)    # (TB, 128)
    h = ln_tanh(h, p[2:3, :], p[3:4, :])
    # Fused heads + constant logp / entropy columns, single 128-wide store.
    out_ref[...] = (jnp.dot(h, wh_ref[...], preferred_element_type=jnp.float32)
                    + p[4:5, :])


def _orthogonal(key, out_dim, in_dim, gain):
    """PyTorch-style orthogonal init on (out, in), returned transposed as (in, out)."""
    w = jax.nn.initializers.orthogonal(scale=gain)(key, (out_dim, in_dim), jnp.float32)
    return jnp.asarray(w).T


def make_params(num_inputs, hidden_size, action_dim, seed=0):
    keys = jax.random.split(jax.random.PRNGKey(seed), 8)
    g = float(np.sqrt(2.0))
    params = {
        # actor (bias-free linears because layernorm=True)
        "wa1": _orthogonal(keys[0], hidden_size, num_inputs, g),
        "ga1": jnp.ones((1, hidden_size), jnp.float32),
        "ba1": jnp.zeros((1, hidden_size), jnp.float32),
        "wa2": _orthogonal(keys[1], hidden_size, hidden_size, g),
        "ga2": jnp.ones((1, hidden_size), jnp.float32),
        "ba2": jnp.zeros((1, hidden_size), jnp.float32),
        # critic
        "wc1": _orthogonal(keys[2], hidden_size, num_inputs, g),
        "gc1": jnp.ones((1, hidden_size), jnp.float32),
        "bc1": jnp.zeros((1, hidden_size), jnp.float32),
        "wc2": _orthogonal(keys[3], hidden_size, hidden_size, g),
        "gc2": jnp.ones((1, hidden_size), jnp.float32),
        "bc2": jnp.zeros((1, hidden_size), jnp.float32),
        # critic_linear
        "wcl": _orthogonal(keys[4], 1, hidden_size, g),
        "bcl": jnp.zeros((1, 1), jnp.float32),
        # DiagGaussian fc_mean (gain 1, bias 0) and logstd (AddBias init 0)
        "wd": _orthogonal(keys[5], action_dim, hidden_size, 1.0),
        "bd": jnp.zeros((1, action_dim), jnp.float32),
        "logstd": jnp.zeros((1, action_dim), jnp.float32),
    }
    return params


def pack_params(params, hidden=HIDDEN, action_dim=None):
    """Host-side fusion of the 17 small arrays into 4 TPU-friendly operands."""
    H = hidden
    A = params["wd"].shape[1] if action_dim is None else action_dim
    assert A + 3 <= WIDE, "action_dim too large for the 128-wide output slab"
    f32 = jnp.float32

    W1 = jnp.concatenate([params["wa1"], params["wc1"]], axis=1).astype(f32)   # (F, 128)

    W2 = jnp.zeros((2 * H, 2 * H), f32)
    W2 = W2.at[:H, :H].set(params["wa2"]).at[H:, H:].set(params["wc2"])        # (128, 128)

    Wh = jnp.zeros((2 * H, WIDE), f32)
    Wh = Wh.at[:H, :A].set(params["wd"])           # actor half -> mean (= action)
    Wh = Wh.at[H:, A:A + 1].set(params["wcl"])     # critic half -> value

    logstd = params["logstd"][0]
    # deterministic: action == mean  =>  diff == 0, so log_prob is a constant per row
    logp_const = -jnp.sum(logstd) - 0.5 * A * LOG_2PI
    ent_const = jnp.sum(0.5 + 0.5 * LOG_2PI + logstd)

    bh = jnp.zeros((WIDE,), f32)
    bh = bh.at[:A].set(params["bd"][0]).at[A].set(params["bcl"][0, 0])
    bh = bh.at[A + 1].set(logp_const).at[A + 2].set(ent_const)

    P = jnp.zeros((8, WIDE), f32)
    P = P.at[0, :H].set(params["ga1"][0]).at[0, H:2 * H].set(params["gc1"][0])
    P = P.at[1, :H].set(params["ba1"][0]).at[1, H:2 * H].set(params["bc1"][0])
    P = P.at[2, :H].set(params["ga2"][0]).at[2, H:2 * H].set(params["gc2"][0])
    P = P.at[3, :H].set(params["ba2"][0]).at[3, H:2 * H].set(params["bc2"][0])
    P = P.at[4, :].set(bh)
    return W1, W2, Wh, P


def policy_act(inputs, rnn_hxs, masks, packed, action_dim, block_b=512):
    """Equivalent of Policy.act(inputs, rnn_hxs, masks, deterministic=True)."""
    del masks  # only used by the recurrent path
    W1, W2, Wh, P = packed
    B, F = inputs.shape
    A = action_dim

    # Batch tile: multiple of 8 sublanes, capped for VMEM (safe on v7x's 64 MiB too).
    TB = min(block_b, B)
    TB = max(8, ((TB + 7) // 8) * 8)
    B_pad = pl.cdiv(B, TB) * TB
    x = inputs
    if B_pad != B:
        x = jnp.concatenate([x, jnp.zeros((B_pad - B, F), inputs.dtype)], axis=0)

    const = lambda i: (0, 0)
    slab = pl.pallas_call(
        _policy_kernel,
        out_shape=jax.ShapeDtypeStruct((B_pad, WIDE), jnp.float32),
        grid=(B_pad // TB,),
        in_specs=[
            pl.BlockSpec((TB, F), lambda i: (i, 0)),
            pl.BlockSpec(W1.shape, const),
            pl.BlockSpec(W2.shape, const),
            pl.BlockSpec(Wh.shape, const),
            pl.BlockSpec(P.shape, const),
        ],
        out_specs=pl.BlockSpec((TB, WIDE), lambda i: (i, 0)),
        compiler_params=pltpu.CompilerParams(dimension_semantics=("parallel",)),
    )(x, W1, W2, Wh, P)

    action = slab[:B, :A]
    value = slab[:B, A:A + 1]
    logp = slab[:B, A + 1:A + 2]
    ent = slab[:1, A + 2:A + 3]
    return value, action, logp, ent, rnn_hxs


def _reference(inputs, params):
    """Pure-JAX reference of the same forward pass (for a sanity check)."""
    def ln_tanh(h, g, b):
        mu = jnp.mean(h, axis=-1, keepdims=True)
        var = jnp.mean((h - mu) ** 2, axis=-1, keepdims=True)
        return jnp.tanh((h - mu) / jnp.sqrt(var + LN_EPS) * g + b)

    ha = ln_tanh(inputs @ params["wa1"], params["ga1"], params["ba1"])
    ha = ln_tanh(ha @ params["wa2"], params["ga2"], params["ba2"])
    hc = ln_tanh(inputs @ params["wc1"], params["gc1"], params["bc1"])
    hc = ln_tanh(hc @ params["wc2"], params["gc2"], params["bc2"])
    value = hc @ params["wcl"] + params["bcl"]
    mean = ha @ params["wd"] + params["bd"]
    logstd = params["logstd"]
    logp = jnp.sum(-logstd - 0.5 * LOG_2PI + jnp.zeros_like(mean),
                   axis=-1, keepdims=True)
    ent = jnp.sum(0.5 + 0.5 * LOG_2PI + logstd, axis=-1, keepdims=True)
    return value, mean, logp, ent


if __name__ == "__main__":
    batch = 8
    num_inputs = 16     # 1-D obs_shape => MLPBase
    action_dim = 6      # Box action space => DiagGaussian

    key = jax.random.PRNGKey(0)
    k_x, k_p = jax.random.split(key)
    x = jax.random.normal(k_x, (batch, num_inputs), jnp.float32)
    rnn_hxs = jnp.zeros((batch, 1), jnp.float32)   # non-recurrent: hidden-state size 1
    masks = jnp.ones((batch, 1), jnp.float32)

    params = make_params(num_inputs, HIDDEN, action_dim, seed=0)
    # Perturb LN affines / biases / logstd so the packing paths are fully exercised.
    kp = jax.random.split(k_p, 11)
    for idx, name in enumerate(
            ["ga1", "ba1", "ga2", "ba2", "gc1", "bc1", "gc2", "bc2"]):
        params[name] = params[name] + 0.1 * jax.random.normal(
            kp[idx], params[name].shape, jnp.float32)
    params["logstd"] = 0.1 * jax.random.normal(kp[8], params["logstd"].shape, jnp.float32)
    params["bd"] = 0.1 * jax.random.normal(kp[9], params["bd"].shape, jnp.float32)
    params["bcl"] = 0.1 * jax.random.normal(kp[10], params["bcl"].shape, jnp.float32)

    packed = pack_params(params, HIDDEN, action_dim)

    value, action, logp, ent, rnn_hxs_out = policy_act(
        x, rnn_hxs, masks, packed, action_dim)
    jax.block_until_ready((value, action, logp, ent, rnn_hxs_out))

    v_ref, a_ref, lp_ref, e_ref = _reference(x, params)
    np.testing.assert_allclose(np.asarray(value), np.asarray(v_ref), rtol=1e-5, atol=1e-5)
    np.testing.assert_allclose(np.asarray(action), np.asarray(a_ref), rtol=1e-5, atol=1e-5)
    np.testing.assert_allclose(np.asarray(logp), np.asarray(lp_ref), rtol=1e-5, atol=1e-5)
    np.testing.assert_allclose(np.asarray(ent), np.asarray(e_ref), rtol=1e-5, atol=1e-5)

    print("KERNEL_OK")
</pallas_src>

<mosaic_0001>
module attributes {stable_mosaic.version = 11 : i64} {
  func.func @_policy_kernel(%arg0: i32, %arg1: memref<8x16xf32, #tpu.memory_space<vmem>>, %arg2: memref<16x128xf32, #tpu.memory_space<vmem>>, %arg3: memref<128x128xf32, #tpu.memory_space<vmem>>, %arg4: memref<128x128xf32, #tpu.memory_space<vmem>>, %arg5: memref<8x128xf32, #tpu.memory_space<vmem>>, %arg6: memref<8x128xf32, #tpu.memory_space<vmem>>) attributes {dimension_semantics = [#tpu.dimension_semantics<parallel>], iteration_bounds = array<i64: 1>, scalar_prefetch = 0 : i64, scratch_operands = 0 : i64, tpu.core_type = #tpu.core_type<tc>, window_params = [{transform_indices = @transform_0, window_bounds = array<i64: 8, 16>}, {pipeline_mode = #tpu.pipeline_mode<synchronous>, transform_indices = @transform_1, window_bounds = array<i64: 16, 128>}, {pipeline_mode = #tpu.pipeline_mode<synchronous>, transform_indices = @transform_2, window_bounds = array<i64: 128, 128>}, {pipeline_mode = #tpu.pipeline_mode<synchronous>, transform_indices = @transform_3, window_bounds = array<i64: 128, 128>}, {pipeline_mode = #tpu.pipeline_mode<synchronous>, transform_indices = @transform_4, window_bounds = array<i64: 8, 128>}, {transform_indices = @transform_5, window_bounds = array<i64: 8, 128>}]} {
    %c0 = arith.constant 0 : index
    %c0_0 = arith.constant 0 : index
    %0 = vector.load %arg1[%c0, %c0_0] : memref<8x16xf32, #tpu.memory_space<vmem>>, vector<8x16xf32>
    %c0_1 = arith.constant 0 : index
    %c0_2 = arith.constant 0 : index
    %1 = vector.load %arg5[%c0_1, %c0_2] : memref<8x128xf32, #tpu.memory_space<vmem>>, vector<8x128xf32>
    %2 = tpu.iota {dimensions = array<i32: 1>} : vector<1x128xi32>
    %c64_i32 = arith.constant 64 : i32
    %3 = vector.broadcast %c64_i32 : i32 to vector<1x128xi32>
    %4 = arith.cmpi slt, %2, %3 : vector<1x128xi32>
    %5 = arith.extui %4 : vector<1x128xi1> to vector<1x128xi32>
    %6 = arith.sitofp %5 : vector<1x128xi32> to vector<1x128xf32>
    %cst = arith.constant 1.000000e+00 : f32
    %7 = vector.broadcast %cst : f32 to vector<1x128xf32>
    %8 = arith.subf %7, %6 : vector<1x128xf32>
    %c0_3 = arith.constant 0 : index
    %c0_4 = arith.constant 0 : index
    %9 = vector.load %arg2[%c0_3, %c0_4] : memref<16x128xf32, #tpu.memory_space<vmem>>, vector<16x128xf32>
    %cst_5 = arith.constant dense<0.000000e+00> : vector<8x128xf32>
    %10 = tpu.matmul %0, %9, %cst_5 {dimension_numbers = #tpu.dot_dimension_numbers<[1], [0], [0], [1], [0, 0, 1, 1], [], []>} : vector<8x16xf32>, vector<16x128xf32>, vector<8x128xf32> -> vector<8x128xf32>
    %11 = vector.extract_strided_slice %1 {offsets = [0, 0], sizes = [1, 128], strides = [1, 1]} : vector<8x128xf32> to vector<1x128xf32>
    %12 = vector.extract_strided_slice %1 {offsets = [1, 0], sizes = [1, 128], strides = [1, 1]} : vector<8x128xf32> to vector<1x128xf32>
    %13 = vector.broadcast %6 : vector<1x128xf32> to vector<8x128xf32>
    %14 = arith.mulf %10, %13 : vector<8x128xf32>
    %cst_6 = arith.constant dense<0.000000e+00> : vector<8xf32>
    %15 = vector.multi_reduction <add>, %14, %cst_6 [1] : vector<8x128xf32> to vector<8xf32>
    %16 = vector.shape_cast %15 : vector<8xf32> to vector<8x1xf32>
    %17 = vector.broadcast %16 : vector<8x1xf32> to vector<8x128xf32>
    %18 = vector.broadcast %6 : vector<1x128xf32> to vector<8x128xf32>
    %19 = arith.mulf %17, %18 : vector<8x128xf32>
    %20 = vector.broadcast %8 : vector<1x128xf32> to vector<8x128xf32>
    %21 = arith.mulf %10, %20 : vector<8x128xf32>
    %cst_7 = arith.constant dense<0.000000e+00> : vector<8xf32>
    %22 = vector.multi_reduction <add>, %21, %cst_7 [1] : vector<8x128xf32> to vector<8xf32>
    %23 = vector.shape_cast %22 : vector<8xf32> to vector<8x1xf32>
    %24 = vector.broadcast %23 : vector<8x1xf32> to vector<8x128xf32>
    %25 = vector.broadcast %8 : vector<1x128xf32> to vector<8x128xf32>
    %26 = arith.mulf %24, %25 : vector<8x128xf32>
    %27 = arith.addf %19, %26 : vector<8x128xf32>
    %cst_8 = arith.constant 1.562500e-02 : f32
    %28 = vector.broadcast %cst_8 : f32 to vector<8x128xf32>
    %29 = arith.mulf %27, %28 : vector<8x128xf32>
    %30 = arith.subf %10, %29 : vector<8x128xf32>
    %31 = arith.mulf %30, %30 : vector<8x128xf32>
    %32 = vector.broadcast %6 : vector<1x128xf32> to vector<8x128xf32>
    %33 = arith.mulf %31, %32 : vector<8x128xf32>
    %cst_9 = arith.constant dense<0.000000e+00> : vector<8xf32>
    %34 = vector.multi_reduction <add>, %33, %cst_9 [1] : vector<8x128xf32> to vector<8xf32>
    %35 = vector.shape_cast %34 : vector<8xf32> to vector<8x1xf32>
    %36 = vector.broadcast %35 : vector<8x1xf32> to vector<8x128xf32>
    %37 = vector.broadcast %6 : vector<1x128xf32> to vector<8x128xf32>
    %38 = arith.mulf %36, %37 : vector<8x128xf32>
    %39 = arith.mulf %30, %30 : vector<8x128xf32>
    %40 = vector.broadcast %8 : vector<1x128xf32> to vector<8x128xf32>
    %41 = arith.mulf %39, %40 : vector<8x128xf32>
    %cst_10 = arith.constant dense<0.000000e+00> : vector<8xf32>
    %42 = vector.multi_reduction <add>, %41, %cst_10 [1] : vector<8x128xf32> to vector<8xf32>
    %43 = vector.shape_cast %42 : vector<8xf32> to vector<8x1xf32>
    %44 = vector.broadcast %43 : vector<8x1xf32> to vector<8x128xf32>
    %45 = vector.broadcast %8 : vector<1x128xf32> to vector<8x128xf32>
    %46 = arith.mulf %44, %45 : vector<8x128xf32>
    %47 = arith.addf %38, %46 : vector<8x128xf32>
    %cst_11 = arith.constant 1.562500e-02 : f32
    %48 = vector.broadcast %cst_11 : f32 to vector<8x128xf32>
    %49 = arith.mulf %47, %48 : vector<8x128xf32>
    %cst_12 = arith.constant 9.99999974E-6 : f32
    %50 = vector.broadcast %cst_12 : f32 to vector<8x128xf32>
    %51 = arith.addf %49, %50 : vector<8x128xf32>
    %52 = math.rsqrt %51 : vector<8x128xf32>
    %53 = arith.mulf %30, %52 : vector<8x128xf32>
    %54 = vector.broadcast %11 : vector<1x128xf32> to vector<8x128xf32>
    %55 = arith.mulf %53, %54 : vector<8x128xf32>
    %56 = vector.broadcast %12 : vector<1x128xf32> to vector<8x128xf32>
    %57 = arith.addf %55, %56 : vector<8x128xf32>
    %58 = math.tanh %57 : vector<8x128xf32>
    %c0_13 = arith.constant 0 : index
    %c0_14 = arith.constant 0 : index
    %59 = vector.load %arg3[%c0_13, %c0_14] : memref<128x128xf32, #tpu.memory_space<vmem>>, vector<128x128xf32>
    %cst_15 = arith.constant dense<0.000000e+00> : vector<8x128xf32>
    %60 = tpu.matmul %58, %59, %cst_15 {dimension_numbers = #tpu.dot_dimension_numbers<[1], [0], [0], [1], [0, 0, 1, 1], [], []>} : vector<8x128xf32>, vector<128x128xf32>, vector<8x128xf32> -> vector<8x128xf32>
    %61 = vector.extract_strided_slice %1 {offsets = [2, 0], sizes = [1, 128], strides = [1, 1]} : vector<8x128xf32> to vector<1x128xf32>
    %62 = vector.extract_strided_slice %1 {offsets = [3, 0], sizes = [1, 128], strides = [1, 1]} : vector<8x128xf32> to vector<1x128xf32>
    %63 = vector.broadcast %6 : vector<1x128xf32> to vector<8x128xf32>
    %64 = arith.mulf %60, %63 : vector<8x128xf32>
    %cst_16 = arith.constant dense<0.000000e+00> : vector<8xf32>
    %65 = vector.multi_reduction <add>, %64, %cst_16 [1] : vector<8x128xf32> to vector<8xf32>
    %66 = vector.shape_cast %65 : vector<8xf32> to vector<8x1xf32>
    %67 = vector.broadcast %66 : vector<8x1xf32> to vector<8x128xf32>
    %68 = vector.broadcast %6 : vector<1x128xf32> to vector<8x128xf32>
    %69 = arith.mulf %67, %68 : vector<8x128xf32>
    %70 = vector.broadcast %8 : vector<1x128xf32> to vector<8x128xf32>
    %71 = arith.mulf %60, %70 : vector<8x128xf32>
    %cst_17 = arith.constant dense<0.000000e+00> : vector<8xf32>
    %72 = vector.multi_reduction <add>, %71, %cst_17 [1] : vector<8x128xf32> to vector<8xf32>
    %73 = vector.shape_cast %72 : vector<8xf32> to vector<8x1xf32>
    %74 = vector.broadcast %73 : vector<8x1xf32> to vector<8x128xf32>
    %75 = vector.broadcast %8 : vector<1x128xf32> to vector<8x128xf32>
    %76 = arith.mulf %74, %75 : vector<8x128xf32>
    %77 = arith.addf %69, %76 : vector<8x128xf32>
    %cst_18 = arith.constant 1.562500e-02 : f32
    %78 = vector.broadcast %cst_18 : f32 to vector<8x128xf32>
    %79 = arith.mulf %77, %78 : vector<8x128xf32>
    %80 = arith.subf %60, %79 : vector<8x128xf32>
    %81 = arith.mulf %80, %80 : vector<8x128xf32>
    %82 = vector.broadcast %6 : vector<1x128xf32> to vector<8x128xf32>
    %83 = arith.mulf %81, %82 : vector<8x128xf32>
    %cst_19 = arith.constant dense<0.000000e+00> : vector<8xf32>
    %84 = vector.multi_reduction <add>, %83, %cst_19 [1] : vector<8x128xf32> to vector<8xf32>
    %85 = vector.shape_cast %84 : vector<8xf32> to vector<8x1xf32>
    %86 = vector.broadcast %85 : vector<8x1xf32> to vector<8x128xf32>
    %87 = vector.broadcast %6 : vector<1x128xf32> to vector<8x128xf32>
    %88 = arith.mulf %86, %87 : vector<8x128xf32>
    %89 = arith.mulf %80, %80 : vector<8x128xf32>
    %90 = vector.broadcast %8 : vector<1x128xf32> to vector<8x128xf32>
    %91 = arith.mulf %89, %90 : vector<8x128xf32>
    %cst_20 = arith.constant dense<0.000000e+00> : vector<8xf32>
    %92 = vector.multi_reduction <add>, %91, %cst_20 [1] : vector<8x128xf32> to vector<8xf32>
    %93 = vector.shape_cast %92 : vector<8xf32> to vector<8x1xf32>
    %94 = vector.broadcast %93 : vector<8x1xf32> to vector<8x128xf32>
    %95 = vector.broadcast %8 : vector<1x128xf32> to vector<8x128xf32>
    %96 = arith.mulf %94, %95 : vector<8x128xf32>
    %97 = arith.addf %88, %96 : vector<8x128xf32>
    %cst_21 = arith.constant 1.562500e-02 : f32
    %98 = vector.broadcast %cst_21 : f32 to vector<8x128xf32>
    %99 = arith.mulf %97, %98 : vector<8x128xf32>
    %cst_22 = arith.constant 9.99999974E-6 : f32
    %100 = vector.broadcast %cst_22 : f32 to vector<8x128xf32>
    %101 = arith.addf %99, %100 : vector<8x128xf32>
    %102 = math.rsqrt %101 : vector<8x128xf32>
    %103 = arith.mulf %80, %102 : vector<8x128xf32>
    %104 = vector.broadcast %61 : vector<1x128xf32> to vector<8x128xf32>
    %105 = arith.mulf %103, %104 : vector<8x128xf32>
    %106 = vector.broadcast %62 : vector<1x128xf32> to vector<8x128xf32>
    %107 = arith.addf %105, %106 : vector<8x128xf32>
    %108 = math.tanh %107 : vector<8x128xf32>
    %c0_23 = arith.constant 0 : index
    %c0_24 = arith.constant 0 : index
    %109 = vector.load %arg4[%c0_23, %c0_24] : memref<128x128xf32, #tpu.memory_space<vmem>>, vector<128x128xf32>
    %cst_25 = arith.constant dense<0.000000e+00> : vector<8x128xf32>
    %110 = tpu.matmul %108, %109, %cst_25 {dimension_numbers = #tpu.dot_dimension_numbers<[1], [0], [0], [1], [0, 0, 1, 1], [], []>} : vector<8x128xf32>, vector<128x128xf32>, vector<8x128xf32> -> vector<8x128xf32>
    %111 = vector.extract_strided_slice %1 {offsets = [4, 0], sizes = [1, 128], strides = [1, 1]} : vector<8x128xf32> to vector<1x128xf32>
    %112 = vector.broadcast %111 : vector<1x128xf32> to vector<8x128xf32>
    %113 = arith.addf %110, %112 : vector<8x128xf32>
    %c0_26 = arith.constant 0 : index
    %c0_27 = arith.constant 0 : index
    %114 = vector.load %arg6[%c0_26, %c0_27] : memref<8x128xf32, #tpu.memory_space<vmem>>, vector<8x128xf32>
    tpu.vector_store %arg6[%c0_26, %c0_27], %113 {strides = array<i32>} : memref<8x128xf32, #tpu.memory_space<vmem>>, vector<8x128xf32>,
    return
  }
  func.func @transform_0(%arg0: i32) -> (i32, i32) {
    %c0_i32 = arith.constant 0 : i32
    %c0_i32_0 = arith.constant 0 : i32
    return %arg0, %c0_i32 : i32, i32
  }
  func.func @transform_1(%arg0: i32) -> (i32, i32) {
    %c0_i32 = arith.constant 0 : i32
    %c0_i32_0 = arith.constant 0 : i32
    %c0_i32_1 = arith.constant 0 : i32
    return %c0_i32, %c0_i32_0 : i32, i32
  }
  func.func @transform_2(%arg0: i32) -> (i32, i32) {
    %c0_i32 = arith.constant 0 : i32
    %c0_i32_0 = arith.constant 0 : i32
    %c0_i32_1 = arith.constant 0 : i32
    return %c0_i32, %c0_i32_0 : i32, i32
  }
  func.func @transform_3(%arg0: i32) -> (i32, i32) {
    %c0_i32 = arith.constant 0 : i32
    %c0_i32_0 = arith.constant 0 : i32
    %c0_i32_1 = arith.constant 0 : i32
    return %c0_i32, %c0_i32_0 : i32, i32
  }
  func.func @transform_4(%arg0: i32) -> (i32, i32) {
    %c0_i32 = arith.constant 0 : i32
    %c0_i32_0 = arith.constant 0 : i32
    %c0_i32_1 = arith.constant 0 : i32
    return %c0_i32, %c0_i32_0 : i32, i32
  }
  func.func @transform_5(%arg0: i32) -> (i32, i32) {
    %c0_i32 = arith.constant 0 : i32
    %c0_i32_0 = arith.constant 0 : i32
    return %arg0, %c0_i32 : i32, i32
  }
}

</mosaic_0001>

<llo_original>
// kernel: tpu_custom_call.1
$region0: #{tpu_custom_call.1}
  #allocation0 [shape = 'u32[]', space=smem, size = 0x4, offset = 0x4, fixed_abs, tag = 'smem constant byte address 0x4 - core index']
  #allocation1 [shape = 'u32[72,128]{1,0:T(1,128)}', space=vmem, size = 0x9000, scoped, tag = 'internal scratch']
  %s0 = inlined_call_operand.hbm [shape: f32[8,16], index: 0, kind: input, shape index: {}]
  %s1 = inlined_call_operand.hbm [shape: f32[16,128], index: 1, kind: input, shape index: {}]
  %s2 = inlined_call_operand.hbm [shape: f32[128,128], index: 2, kind: input, shape index: {}]
  %s3 = inlined_call_operand.hbm [shape: f32[128,128], index: 3, kind: input, shape index: {}]
  %s4 = inlined_call_operand.hbm [shape: f32[8,128], index: 4, kind: input, shape index: {}]
  %s5 = inlined_call_operand.hbm [shape: f32[8,128], index: 5, kind: output, shape index: {}]
  %s6 = sld [smem:[#allocation0]]
  $region50: #{tpu_custom_call.1} parent=0
    _
  %s8 = ssub.s32 1, %s6
  %s9 = scalar_select 0, %s8, %s6
  $region1: #{tpu_custom_call.1} parent=0
    #allocation2 [shape = 'u8[4096]{0}', space=vmem, size = 0x1000, scoped, tag = 'input window, operand 0, single buffered']
    #allocation3 [shape = 's32[1]{0}', space=sflag, size = 0x4, scoped, tag = 'scoped memory for tpu_custom_call.1']
    #allocation4 [shape = 's32[1]{0}', space=sflag, size = 0x4, scoped, tag = 'scoped memory for tpu_custom_call.1']
    #allocation5 [shape = 'u8[8192]{0}', space=vmem, size = 0x2000, scoped, tag = 'input window, operand 1, single buffered']
    #allocation6 [shape = 's32[1]{0}', space=sflag, size = 0x4, scoped, tag = 'scoped memory for tpu_custom_call.1']
    #allocation7 [shape = 'u8[65536]{0}', space=vmem, size = 0x10000, scoped, tag = 'input window, operand 2, single buffered']
    #allocation8 [shape = 'u8[65536]{0}', space=vmem, size = 0x10000, scoped, tag = 'input window, operand 3, single buffered']
    #allocation9 [shape = 's32[1]{0}', space=sflag, size = 0x4, scoped, tag = 'scoped memory for tpu_custom_call.1']
    #allocation10 [shape = 'u8[4096]{0}', space=vmem, size = 0x1000, scoped, tag = 'input window, operand 4, single buffered']
    #allocation11 [shape = 'u8[4096]{0}', space=vmem, size = 0x1000, scoped, tag = 'output window, operand 0, single buffered']
    %10 = vsyncpa [#allocation3], 0
    %11 = vsyncpa [#allocation6], 0
    %12 = vsyncpa [#allocation9], 0
    %13 = vsyncpa [#allocation4], 0
    // Predicated region
    $region2: #{tpu_custom_call.1} parent=1 // pred_check
      _
    $region3: #{tpu_custom_call.1} parent=1 // pred_check_branch
      %15 = sbr.rel (0) target = $region5
    $region4: #{tpu_custom_call.1} parent=1 // pred_region
      %17 = vsyncadd [#allocation3], 0
      %s19 = sshll.u32 %s0, 4
      %s20 = int_to_ptr.hbm [resolvable:$true] %s19
      %s21 = sshll.u32 [#allocation2], 4
      %s22 = int_to_ptr.vmem [resolvable:$true] %s21
      %24 = dma.hbm_to_vmem [thread:$0]  %s20, 128, %s22, [#allocation3]
    $region5: #{tpu_custom_call.1} parent=1 // pred_fallthru
      _
    // Predicated region
    $region6: #{tpu_custom_call.1} parent=1 // pred_check
      _
    $region7: #{tpu_custom_call.1} parent=1 // pred_check_branch
      %26 = sbr.rel (0) target = $region9
    $region8: #{tpu_custom_call.1} parent=1 // pred_region
      %28 = vsyncadd [#allocation6], 0
      %s29 = sshll.u32 %s1, 4
      %s30 = int_to_ptr.hbm [resolvable:$true] %s29
      %s31 = sshll.u32 [#allocation5], 4
      %s32 = int_to_ptr.vmem [resolvable:$true] %s31
      %37 = dma.hbm_to_vmem [thread:$0]  %s30, 256, %s32, [#allocation6], 128, 128, 8
    $region9: #{tpu_custom_call.1} parent=1 // pred_fallthru
      _
    // Predicated region
    $region10: #{tpu_custom_call.1} parent=1 // pred_check
      _
    $region11: #{tpu_custom_call.1} parent=1 // pred_check_branch
      %39 = sbr.rel (0) target = $region13
    $region12: #{tpu_custom_call.1} parent=1 // pred_region
      %41 = vsyncadd [#allocation6], 0
      %s42 = sshll.u32 %s2, 4
      %s43 = int_to_ptr.hbm [resolvable:$true] %s42
      %s44 = sshll.u32 [#allocation7], 4
      %s45 = int_to_ptr.vmem [resolvable:$true] %s44
      %50 = dma.hbm_to_vmem [thread:$0]  %s43, 2048, %s45, [#allocation6], 128, 128, 8
    $region13: #{tpu_custom_call.1} parent=1 // pred_fallthru
      _
    // Predicated region
    $region14: #{tpu_custom_call.1} parent=1 // pred_check
      _
    $region15: #{tpu_custom_call.1} parent=1 // pred_check_branch
      %52 = sbr.rel (0) target = $region17
    $region16: #{tpu_custom_call.1} parent=1 // pred_region
      %54 = vsyncadd [#allocation9], 0
      %s55 = sshll.u32 %s3, 4
      %s56 = int_to_ptr.hbm [resolvable:$true] %s55
      %s57 = sshll.u32 [#allocation8], 4
      %s58 = int_to_ptr.vmem [resolvable:$true] %s57
      %63 = dma.hbm_to_vmem [thread:$0]  %s56, 2048, %s58, [#allocation9], 128, 128, 8
    $region17: #{tpu_custom_call.1} parent=1 // pred_fallthru
      _
    // Predicated region
    $region18: #{tpu_custom_call.1} parent=1 // pred_check
      _
    $region19: #{tpu_custom_call.1} parent=1 // pred_check_branch
      %65 = sbr.rel (0) target = $region21
    $region20: #{tpu_custom_call.1} parent=1 // pred_region
      %67 = vsyncadd [#allocation9], 0
      %s69 = sshll.u32 %s4, 4
      %s70 = int_to_ptr.hbm [resolvable:$true] %s69
      %s71 = sshll.u32 [#allocation10], 4
      %s72 = int_to_ptr.vmem [resolvable:$true] %s71
      %74 = dma.hbm_to_vmem [thread:$0]  %s70, 128, %s72, [#allocation9]
    $region21: #{tpu_custom_call.1} parent=1 // pred_fallthru
      _
    // Predicated region
    $region22: #{tpu_custom_call.1} parent=1 // pred_check
      _
    $region23: #{tpu_custom_call.1} parent=1 // pred_check_branch
      %76 = sbr.rel (0) target = $region25
    $region24: #{tpu_custom_call.1} parent=1 // pred_region
      %78 = dma.done [#allocation3], 128
    $region25: #{tpu_custom_call.1} parent=1 // pred_fallthru
      _
    // Predicated region
    $region26: #{tpu_custom_call.1} parent=1 // pred_check
      _
    $region27: #{tpu_custom_call.1} parent=1 // pred_check_branch
      %80 = sbr.rel (0) target = $region29
    $region28: #{tpu_custom_call.1} parent=1 // pred_region
      %82 = dma.done [#allocation6], 256
    $region29: #{tpu_custom_call.1} parent=1 // pred_fallthru
      _
    // Predicated region
    $region30: #{tpu_custom_call.1} parent=1 // pred_check
      _
    $region31: #{tpu_custom_call.1} parent=1 // pred_check_branch
      %84 = sbr.rel (0) target = $region33
    $region32: #{tpu_custom_call.1} parent=1 // pred_region
      %86 = dma.done [#allocation6], 2048
    $region33: #{tpu_custom_call.1} parent=1 // pred_fallthru
      _
    // Predicated region
    $region34: #{tpu_custom_call.1} parent=1 // pred_check
      _
    $region35: #{tpu_custom_call.1} parent=1 // pred_check_branch
      %88 = sbr.rel (0) target = $region37
    $region36: #{tpu_custom_call.1} parent=1 // pred_region
      %90 = dma.done [#allocation9], 2048
    $region37: #{tpu_custom_call.1} parent=1 // pred_fallthru
      _
    // Predicated region
    $region38: #{tpu_custom_call.1} parent=1 // pred_check
      _
    $region39: #{tpu_custom_call.1} parent=1 // pred_check_branch
      %92 = sbr.rel (0) target = $region41
    $region40: #{tpu_custom_call.1} parent=1 // pred_region
      %94 = dma.done [#allocation9], 128
    $region41: #{tpu_custom_call.1} parent=1 // pred_fallthru
      _
    %v95 = vld [vmem:[#allocation2] sm:$0xff]
    %v96 = vld [vmem:[#allocation10] sm:$0xff]
    %v97 = vlaneseq
    %v98 = vand.u32 %v97, 127
    %vm99 = vcmp.lt.s32.totalorder %v98, 64
    %v100 = vsel %vm99, 1, 0
    %v101 = vcvt.s32.f32 %v100
    %v102 = vsub.f32 1.0, %v101
    %v103 = vld [vmem:[#allocation5] sm:$0xff]
    %v104 = vld [vmem:[#allocation5 + $0x8] sm:$0xff]
    %vm105 = vcmask 130048
    %v107 = vsel %vm105, %v95, 0
    %109 = vmatpush.msra.mxu0 0.0
    %110 = vmatpush.msra.mxu0 0.0
    %111 = vmatpush.msra.mxu0 0.0
    %112 = vmatpush.msra.mxu0 0.0
    %113 = vmatpush.msra.mxu0 0.0
    %114 = vmatpush.msra.mxu0 0.0
    %115 = vmatpush.msra.mxu0 0.0
    %116 = vmatpush.msra.mxu0 0.0
    %117 = vmatpush.msra.mxu0 0.0
    %118 = vmatpush.msra.mxu0 0.0
    %119 = vmatpush.msra.mxu0 0.0
    %120 = vmatpush.msra.mxu0 0.0
    %121 = vmatpush.msra.mxu0 0.0
    %122 = vmatpush.msra.mxu0 0.0
    %123 = vmatpush.msra.mxu0 %v104
    %124 = vmatpush.msra.mxu0 %v103
    %125 = vmatmul.f32.gmra.mxu0 %v107
    %v126 = vpop.f32.mrf.mxu0
    %v127 = vadd.f32 0.0, %v126
    %128 = vdwg.mxu0
    %v129 = vmul.f32 %v127, %v101
    %130 = vadd.xlane.f32.xlu0 %v129
    %v131 = vpop.xlane.xlu0 %130
    %v132 = vmul.f32 %v131, %v101
    %v133 = vmul.f32 %v127, %v102
    %134 = vadd.xlane.f32.xlu0 %v133
    %v135 = vpop.xlane.xlu0 %134
    %v136 = vmul.f32 %v135, %v102
    %v137 = vadd.f32 %v132, %v136
    %v138 = vmul.f32 %v137, 0.015625
    %v139 = vsub.f32 %v127, %v138
    %v140 = vmul.f32 %v139, %v139
    %v141 = vmul.f32 %v140, %v101
    %142 = vadd.xlane.f32.xlu0 %v141
    %v143 = vpop.xlane.xlu0 %142
    %v144 = vmul.f32 %v143, %v101
    %v145 = vmul.f32 %v140, %v102
    %146 = vadd.xlane.f32.xlu0 %v145
    %v147 = vpop.xlane.xlu0 %146
    %v148 = vmul.f32 %v147, %v102
    %v149 = vadd.f32 %v144, %v148
    %v150 = vmul.f32 %v149, 0.015625
    %v151 = vadd.f32 %v150, 1e-05
    %v152 = vrsqrt.pop %v151
    %v153 = vmul.f32 %v152, %v151
    %v154 = vmul.f32 %v153, %v152
    %v155 = vmul.f32 0.5, %v154
    %v156 = vsub.f32 1.5, %v155
    %v157 = vmul.f32 %v152, %v156
    %vm158 = vweird.f32 %v151
    %vm159 = vweird.f32 %v152
    %vm160 = vmor %vm158, %vm159
    %v161 = vsel %vm160, %v152, %v157
    %v162 = vmul.f32 %v139, %v161
    %v163 = vperm.slane %v96, 0
    %v164 = vmul.f32 %v162, %v163
    %v165 = vperm.slane %v96, 1
    %v166 = vadd.f32 %v164, %v165
    %v167 = vtanh.pop %v166
    %v168 = vld [vmem:[#allocation7] sm:$0xff]
    %v169 = vld [vmem:[#allocation7 + $0x8] sm:$0xff]
    %v170 = vld [vmem:[#allocation7 + $0x10] sm:$0xff]
    %v171 = vld [vmem:[#allocation7 + $0x18] sm:$0xff]
    %v172 = vld [vmem:[#allocation7 + $0x20] sm:$0xff]
    %v173 = vld [vmem:[#allocation7 + $0x28] sm:$0xff]
    %v174 = vld [vmem:[#allocation7 + $0x30] sm:$0xff]
    %v175 = vld [vmem:[#allocation7 + $0x38] sm:$0xff]
    %v176 = vld [vmem:[#allocation7 + $0x40] sm:$0xff]
    %v177 = vld [vmem:[#allocation7 + $0x48] sm:$0xff]
    %v178 = vld [vmem:[#allocation7 + $0x50] sm:$0xff]
    %v179 = vld [vmem:[#allocation7 + $0x58] sm:$0xff]
    %v180 = vld [vmem:[#allocation7 + $0x60] sm:$0xff]
    %v181 = vld [vmem:[#allocation7 + $0x68] sm:$0xff]
    %v182 = vld [vmem:[#allocation7 + $0x70] sm:$0xff]
    %v183 = vld [vmem:[#allocation7 + $0x78] sm:$0xff]
    %184 = vmatpush.msra.mxu0 %v183
    %185 = vmatpush.msra.mxu0 %v182
    %186 = vmatpush.msra.mxu0 %v181
    %187 = vmatpush.msra.mxu0 %v180
    %188 = vmatpush.msra.mxu0 %v179
    %189 = vmatpush.msra.mxu0 %v178
    %190 = vmatpush.msra.mxu0 %v177
    %191 = vmatpush.msra.mxu0 %v176
    %192 = vmatpush.msra.mxu0 %v175
    %193 = vmatpush.msra.mxu0 %v174
    %194 = vmatpush.msra.mxu0 %v173
    %195 = vmatpush.msra.mxu0 %v172
    %196 = vmatpush.msra.mxu0 %v171
    %197 = vmatpush.msra.mxu0 %v170
    %198 = vmatpush.msra.mxu0 %v169
    %199 = vmatpush.msra.mxu0 %v168
    %200 = vmatmul.f32.gmra.mxu0 %v167
    %v201 = vpop.f32.mrf.mxu0
    %v202 = vadd.f32 0.0, %v201
    %203 = vdwg.mxu0
    %v204 = vmul.f32 %v202, %v101
    %205 = vadd.xlane.f32.xlu0 %v204
    %v206 = vpop.xlane.xlu0 %205
    %v207 = vmul.f32 %v206, %v101
    %v208 = vmul.f32 %v202, %v102
    %209 = vadd.xlane.f32.xlu0 %v208
    %v210 = vpop.xlane.xlu0 %209
    %v211 = vmul.f32 %v210, %v102
    %v212 = vadd.f32 %v207, %v211
    %v213 = vmul.f32 %v212, 0.015625
    %v214 = vsub.f32 %v202, %v213
    %v215 = vmul.f32 %v214, %v214
    %v216 = vmul.f32 %v215, %v101
    %217 = vadd.xlane.f32.xlu0 %v216
    %v218 = vpop.xlane.xlu0 %217
    %v219 = vmul.f32 %v218, %v101
    %v220 = vmul.f32 %v215, %v102
    %221 = vadd.xlane.f32.xlu0 %v220
    %v222 = vpop.xlane.xlu0 %221
    %v223 = vmul.f32 %v222, %v102
    %v224 = vadd.f32 %v219, %v223
    %v225 = vmul.f32 %v224, 0.015625
    %v226 = vadd.f32 %v225, 1e-05
    %v227 = vrsqrt.pop %v226
    %v228 = vmul.f32 %v227, %v226
    %v229 = vmul.f32 %v228, %v227
    %v230 = vmul.f32 0.5, %v229
    %v231 = vsub.f32 1.5, %v230
    %v232 = vmul.f32 %v227, %v231
    %vm233 = vweird.f32 %v226
    %vm234 = vweird.f32 %v227
    %vm235 = vmor %vm233, %vm234
    %v236 = vsel %vm235, %v227, %v232
    %v237 = vmul.f32 %v214, %v236
    %v238 = vperm.slane %v96, 2
    %v239 = vmul.f32 %v237, %v238
    %v240 = vperm.slane %v96, 3
    %v241 = vadd.f32 %v239, %v240
    %v242 = vtanh.pop %v241
    %v243 = vld [vmem:[#allocation8] sm:$0xff]
    %v244 = vld [vmem:[#allocation8 + $0x8] sm:$0xff]
    %v245 = vld [vmem:[#allocation8 + $0x10] sm:$0xff]
    %v246 = vld [vmem:[#allocation8 + $0x18] sm:$0xff]
    %v247 = vld [vmem:[#allocation8 + $0x20] sm:$0xff]
    %v248 = vld [vmem:[#allocation8 + $0x28] sm:$0xff]
    %v249 = vld [vmem:[#allocation8 + $0x30] sm:$0xff]
    %v250 = vld [vmem:[#allocation8 + $0x38] sm:$0xff]
    %v251 = vld [vmem:[#allocation8 + $0x40] sm:$0xff]
    %v252 = vld [vmem:[#allocation8 + $0x48] sm:$0xff]
    %v253 = vld [vmem:[#allocation8 + $0x50] sm:$0xff]
    %v254 = vld [vmem:[#allocation8 + $0x58] sm:$0xff]
    %v255 = vld [vmem:[#allocation8 + $0x60] sm:$0xff]
    %v256 = vld [vmem:[#allocation8 + $0x68] sm:$0xff]
    %v257 = vld [vmem:[#allocation8 + $0x70] sm:$0xff]
    %v258 = vld [vmem:[#allocation8 + $0x78] sm:$0xff]
    %v259 = vperm.slane %v96, 4
    %260 = vmatpush.msra.mxu0 %v258
    %261 = vmatpush.msra.mxu0 %v257
    %262 = vmatpush.msra.mxu0 %v256
    %263 = vmatpush.msra.mxu0 %v255
    %264 = vmatpush.msra.mxu0 %v254
    %265 = vmatpush.msra.mxu0 %v253
    %266 = vmatpush.msra.mxu0 %v252
    %267 = vmatpush.msra.mxu0 %v251
    %268 = vmatpush.msra.mxu0 %v250
    %269 = vmatpush.msra.mxu0 %v249
    %270 = vmatpush.msra.mxu0 %v248
    %271 = vmatpush.msra.mxu0 %v247
    %272 = vmatpush.msra.mxu0 %v246
    %273 = vmatpush.msra.mxu0 %v245
    %274 = vmatpush.msra.mxu0 %v244
    %275 = vmatpush.msra.mxu0 %v243
    %276 = vmatmul.f32.gmra.mxu0 %v242
    %v277 = vpop.f32.mrf.mxu0
    %v278 = vadd.f32 %v259, %v277
    %279 = vdwg.mxu0
    %280 = vst [vmem:[#allocation11] sm:$0xff] %v278
    // Predicated region
    $region42: #{tpu_custom_call.1} parent=1 // pred_check
      _
    $region43: #{tpu_custom_call.1} parent=1 // pred_check_branch
      %282 = sbr.rel (0) target = $region45
    $region44: #{tpu_custom_call.1} parent=1 // pred_region
      %284 = vsyncadd [#allocation4], 0
      %s286 = sshll.u32 [#allocation11], 4
      %s287 = int_to_ptr.vmem [resolvable:$true] %s286
      %s288 = sshll.u32 %s5, 4
      %s289 = int_to_ptr.hbm [resolvable:$true] %s288
      %291 = dma.vmem_to_hbm [thread:$0]  %s287, 128, %s289, [#allocation4]
    $region45: #{tpu_custom_call.1} parent=1 // pred_fallthru
      _
    // Predicated region
    $region46: #{tpu_custom_call.1} parent=1 // pred_check
      _
    $region47: #{tpu_custom_call.1} parent=1 // pred_check_branch
      %293 = sbr.rel (0) target = $region49
    $region48: #{tpu_custom_call.1} parent=1 // pred_region
      %295 = dma.done [#allocation4], 128
    $region49: #{tpu_custom_call.1} parent=1 // pred_fallthru
      _
    %296 = vsyncpa [#allocation3], 1
    %297 = vsyncpa [#allocation6], 1
    %298 = vsyncpa [#allocation9], 1
    %299 = vsyncpa [#allocation4], 1

</llo_original>
